<compile_context>
chip_gen: v7x
topology: tpu7x:2x2x1
jax: 0.10.0
libtpu: 0.0.40
codegen_flags: <defaults>
</compile_context>

<pallas_src>
import functools

import jax
import jax.numpy as jnp
from jax.experimental import pallas as pl
from jax.experimental.pallas import tpu as pltpu


def _joint_grad_kernel(fus_ref, ir_ref, vi_ref, out_ref, acc_ref,
                       *, H, W, TB, NC, inv_n):
    i = pl.program_id(0)

    @pl.when(i == 0)
    def _init():
        acc_ref[...] = jnp.zeros_like(acc_ref)

    def abs_lap16(ref):
        # 16 * |3x3 laplacian| of a (TB, H, W) block.  Reflect padding is fused
        # in by synthesizing border rows/cols (index -1 -> 1, index H -> H-2,
        # i.e. jnp.pad / torch 'reflect').
        p = ref[...].astype(jnp.float32)
        # vertical (sublane-axis) 3-tap sum with reflect boundary
        up = jnp.concatenate([p[:, 1:2, :], p[:, :H - 1, :]], axis=1)
        down = jnp.concatenate([p[:, 1:, :], p[:, H - 2:H - 1, :]], axis=1)
        colsum = up + p + down
        # horizontal (lane-axis) 3-tap sum with reflect boundary
        left = jnp.concatenate([colsum[:, :, 1:2], colsum[:, :, :W - 1]], axis=2)
        right = jnp.concatenate([colsum[:, :, 1:], colsum[:, :, W - 2:W - 1]],
                                axis=2)
        s3x3 = left + colsum + right
        # (sum of 8 neighbours) - 8*center  ==  s3x3 - 9*center
        return jnp.abs(s3x3 - 9.0 * p)

    fus_g = abs_lap16(fus_ref)
    ir_g = abs_lap16(ir_ref)
    vi_g = abs_lap16(vi_ref)
    diff = jnp.abs(jnp.maximum(ir_g, vi_g) - fus_g)

    if NC % TB != 0:  # static: only emit masking when the last block is partial
        sl = jax.lax.broadcasted_iota(jnp.int32, (TB, H, W), 0)
        diff = jnp.where(i * TB + sl < NC, diff, 0.0)

    # Deferred reduction: per step only leading-axis vreg adds.
    acc_ref[...] += jnp.sum(diff, axis=0)

    @pl.when(i == pl.num_programs(0) - 1)
    def _finalize():
        out_ref[...] = (jnp.sum(acc_ref[...]) * inv_n).reshape(1, 1)


def joint_grad_loss(im_fus, im_ir, im_vi, *, tb=None):
    """Pallas implementation of JointGrad.forward. Inputs: NCHW arrays."""
    B, C, H, W = im_fus.shape
    NC = B * C

    # Contiguous reshape (free): fold (N, C) into one batch-of-slices axis.
    fus = im_fus.reshape(NC, H, W)
    ir = im_ir.reshape(NC, H, W)
    vi = im_vi.reshape(NC, H, W)

    if tb is None:
        # Budget ~1 MiB of f32 image data per input per pipeline buffer:
        # 3 inputs x 2 buffers ~ 6 MiB of streamed blocks plus stencil
        # temporaries, comfortably inside scoped VMEM on v5e/v6e/v7x.
        slice_bytes = H * W * 4
        budget = max(1, (1 << 20) // max(slice_bytes, 1))
        tb = min(NC, budget)
        # Prefer a divisor of NC (skips the masked-tail code path entirely)
        # unless that would shrink the block by more than 2x.
        for d in range(tb, max(1, tb // 2) - 1, -1):
            if NC % d == 0:
                tb = d
                break
    tb = max(1, min(int(tb), NC))
    n_steps = pl.cdiv(NC, tb)

    kernel = functools.partial(
        _joint_grad_kernel, H=H, W=W, TB=tb, NC=NC,
        inv_n=1.0 / (16.0 * float(NC) * float(H) * float(W)))

    in_spec = pl.BlockSpec((tb, H, W), lambda i: (i, 0, 0))

    out = pl.pallas_call(
        kernel,
        grid=(n_steps,),
        in_specs=[in_spec, in_spec, in_spec],
        out_specs=pl.BlockSpec((1, 1), lambda i: (0, 0)),
        out_shape=jax.ShapeDtypeStruct((1, 1), jnp.float32),
        scratch_shapes=[pltpu.VMEM((H, W), jnp.float32)],
        compiler_params=pltpu.CompilerParams(
            # output block is a resident accumulator -> reduction axis
            dimension_semantics=("arbitrary",),
            vmem_limit_bytes=32 << 20),
    )(fus, ir, vi)
    # TODO(synk): on v7x the reduction could additionally be split across the
    # two TensorCores (leading "parallel" axis + per-core partial outputs).
    return out[0, 0]


def _joint_grad_ref(im_fus, im_ir, im_vi):
    """Pure-JAX reference for the correctness check."""
    def abs_lap(x):
        p = jnp.pad(x.astype(jnp.float32),
                    ((0, 0), (0, 0), (1, 1), (1, 1)), mode="reflect")
        H, W = x.shape[-2], x.shape[-1]
        neigh = (p[..., 0:H, 0:W] + p[..., 0:H, 1:W + 1] + p[..., 0:H, 2:W + 2]
                 + p[..., 1:H + 1, 0:W] + p[..., 1:H + 1, 2:W + 2]
                 + p[..., 2:H + 2, 0:W] + p[..., 2:H + 2, 1:W + 1]
                 + p[..., 2:H + 2, 2:W + 2])
        center = p[..., 1:H + 1, 1:W + 1]
        return jnp.abs((neigh - 8.0 * center) / 16.0)

    fus_g, ir_g, vi_g = abs_lap(im_fus), abs_lap(im_ir), abs_lap(im_vi)
    return jnp.mean(jnp.abs(jnp.maximum(ir_g, vi_g) - fus_g))


if __name__ == "__main__":
    B, C, H, W = 2, 4, 16, 16
    key = jax.random.PRNGKey(0)
    k1, k2, k3 = jax.random.split(key, 3)
    im_fus = jax.random.uniform(k1, (B, C, H, W), dtype=jnp.float32)
    im_ir = jax.random.uniform(k2, (B, C, H, W), dtype=jnp.float32)
    im_vi = jax.random.uniform(k3, (B, C, H, W), dtype=jnp.float32)

    ref = jax.block_until_ready(_joint_grad_ref(im_fus, im_ir, im_vi))

    # Main path: whole-batch block, single grid step.
    loss = jax.block_until_ready(joint_grad_loss(im_fus, im_ir, im_vi))
    assert jnp.allclose(loss, ref, rtol=1e-5, atol=1e-6), (loss, ref)

    # Also exercise the partial-last-block (masked) path: NC=8, tb=3 -> 3 steps.
    loss_m = jax.block_until_ready(joint_grad_loss(im_fus, im_ir, im_vi, tb=3))
    assert jnp.allclose(loss_m, ref, rtol=1e-5, atol=1e-6), (loss_m, ref)

    print("KERNEL_OK")
</pallas_src>

<mosaic_0001>
module attributes {stable_mosaic.version = 11 : i64} {
  func.func @_joint_grad_kernel(%arg0: i32, %arg1: memref<8x16x16xf32, #tpu.memory_space<vmem>>, %arg2: memref<8x16x16xf32, #tpu.memory_space<vmem>>, %arg3: memref<8x16x16xf32, #tpu.memory_space<vmem>>, %arg4: memref<1x1xf32, #tpu.memory_space<vmem>>, %arg5: memref<16x16xf32, #tpu.memory_space<vmem>>) attributes {dimension_semantics = [#tpu.dimension_semantics<arbitrary>], iteration_bounds = array<i64: 1>, scalar_prefetch = 0 : i64, scratch_operands = 1 : i64, tpu.core_type = #tpu.core_type<tc>, window_params = [{transform_indices = @transform_0, window_bounds = array<i64: 8, 16, 16>}, {transform_indices = @transform_1, window_bounds = array<i64: 8, 16, 16>}, {transform_indices = @transform_2, window_bounds = array<i64: 8, 16, 16>}, {pipeline_mode = #tpu.pipeline_mode<synchronous>, transform_indices = @transform_3, window_bounds = array<i64: 1, 1>}]} {
    %c0_i32 = arith.constant 0 : i32
    %0 = arith.cmpi eq, %arg0, %c0_i32 : i32
    %1 = arith.extui %0 : i1 to i32
    %c0_i32_0 = arith.constant 0 : i32
    %2 = arith.cmpi ne, %1, %c0_i32_0 : i32
    scf.if %2 {
      %cst_18 = arith.constant 0.000000e+00 : f32
      %76 = vector.broadcast %cst_18 : f32 to vector<16x16xf32>
      %c0_19 = arith.constant 0 : index
      %c0_20 = arith.constant 0 : index
      %77 = vector.load %arg5[%c0_19, %c0_20] : memref<16x16xf32, #tpu.memory_space<vmem>>, vector<16x16xf32>
      tpu.vector_store %arg5[%c0_19, %c0_20], %76 {strides = array<i32>} : memref<16x16xf32, #tpu.memory_space<vmem>>, vector<16x16xf32>,
    } else {
    }
    %c0 = arith.constant 0 : index
    %c0_1 = arith.constant 0 : index
    %c0_2 = arith.constant 0 : index
    %3 = vector.load %arg1[%c0, %c0_1, %c0_2] : memref<8x16x16xf32, #tpu.memory_space<vmem>>, vector<8x16x16xf32>
    %4 = vector.extract_strided_slice %3 {offsets = [0, 1, 0], sizes = [8, 1, 16], strides = [1, 1, 1]} : vector<8x16x16xf32> to vector<8x1x16xf32>
    %5 = vector.extract_strided_slice %3 {offsets = [0, 0, 0], sizes = [8, 15, 16], strides = [1, 1, 1]} : vector<8x16x16xf32> to vector<8x15x16xf32>
    %6 = tpu.concatenate %4, %5 in 1 : vector<8x1x16xf32>, vector<8x15x16xf32> -> vector<8x16x16xf32>
    %7 = vector.extract_strided_slice %3 {offsets = [0, 1, 0], sizes = [8, 15, 16], strides = [1, 1, 1]} : vector<8x16x16xf32> to vector<8x15x16xf32>
    %8 = vector.extract_strided_slice %3 {offsets = [0, 14, 0], sizes = [8, 1, 16], strides = [1, 1, 1]} : vector<8x16x16xf32> to vector<8x1x16xf32>
    %9 = tpu.concatenate %7, %8 in 1 : vector<8x15x16xf32>, vector<8x1x16xf32> -> vector<8x16x16xf32>
    %10 = arith.addf %6, %3 : vector<8x16x16xf32>
    %11 = arith.addf %10, %9 : vector<8x16x16xf32>
    %12 = vector.extract_strided_slice %11 {offsets = [0, 0, 1], sizes = [8, 16, 1], strides = [1, 1, 1]} : vector<8x16x16xf32> to vector<8x16x1xf32>
    %13 = vector.extract_strided_slice %11 {offsets = [0, 0, 0], sizes = [8, 16, 15], strides = [1, 1, 1]} : vector<8x16x16xf32> to vector<8x16x15xf32>
    %14 = tpu.concatenate %12, %13 in 2 : vector<8x16x1xf32>, vector<8x16x15xf32> -> vector<8x16x16xf32>
    %15 = vector.extract_strided_slice %11 {offsets = [0, 0, 1], sizes = [8, 16, 15], strides = [1, 1, 1]} : vector<8x16x16xf32> to vector<8x16x15xf32>
    %16 = vector.extract_strided_slice %11 {offsets = [0, 0, 14], sizes = [8, 16, 1], strides = [1, 1, 1]} : vector<8x16x16xf32> to vector<8x16x1xf32>
    %17 = tpu.concatenate %15, %16 in 2 : vector<8x16x15xf32>, vector<8x16x1xf32> -> vector<8x16x16xf32>
    %18 = arith.addf %14, %11 : vector<8x16x16xf32>
    %19 = arith.addf %18, %17 : vector<8x16x16xf32>
    %cst = arith.constant 9.000000e+00 : f32
    %20 = vector.broadcast %cst : f32 to vector<8x16x16xf32>
    %21 = arith.mulf %20, %3 : vector<8x16x16xf32>
    %22 = arith.subf %19, %21 : vector<8x16x16xf32>
    %23 = math.absf %22 : vector<8x16x16xf32>
    %c0_3 = arith.constant 0 : index
    %c0_4 = arith.constant 0 : index
    %c0_5 = arith.constant 0 : index
    %24 = vector.load %arg2[%c0_3, %c0_4, %c0_5] : memref<8x16x16xf32, #tpu.memory_space<vmem>>, vector<8x16x16xf32>
    %25 = vector.extract_strided_slice %24 {offsets = [0, 1, 0], sizes = [8, 1, 16], strides = [1, 1, 1]} : vector<8x16x16xf32> to vector<8x1x16xf32>
    %26 = vector.extract_strided_slice %24 {offsets = [0, 0, 0], sizes = [8, 15, 16], strides = [1, 1, 1]} : vector<8x16x16xf32> to vector<8x15x16xf32>
    %27 = tpu.concatenate %25, %26 in 1 : vector<8x1x16xf32>, vector<8x15x16xf32> -> vector<8x16x16xf32>
    %28 = vector.extract_strided_slice %24 {offsets = [0, 1, 0], sizes = [8, 15, 16], strides = [1, 1, 1]} : vector<8x16x16xf32> to vector<8x15x16xf32>
    %29 = vector.extract_strided_slice %24 {offsets = [0, 14, 0], sizes = [8, 1, 16], strides = [1, 1, 1]} : vector<8x16x16xf32> to vector<8x1x16xf32>
    %30 = tpu.concatenate %28, %29 in 1 : vector<8x15x16xf32>, vector<8x1x16xf32> -> vector<8x16x16xf32>
    %31 = arith.addf %27, %24 : vector<8x16x16xf32>
    %32 = arith.addf %31, %30 : vector<8x16x16xf32>
    %33 = vector.extract_strided_slice %32 {offsets = [0, 0, 1], sizes = [8, 16, 1], strides = [1, 1, 1]} : vector<8x16x16xf32> to vector<8x16x1xf32>
    %34 = vector.extract_strided_slice %32 {offsets = [0, 0, 0], sizes = [8, 16, 15], strides = [1, 1, 1]} : vector<8x16x16xf32> to vector<8x16x15xf32>
    %35 = tpu.concatenate %33, %34 in 2 : vector<8x16x1xf32>, vector<8x16x15xf32> -> vector<8x16x16xf32>
    %36 = vector.extract_strided_slice %32 {offsets = [0, 0, 1], sizes = [8, 16, 15], strides = [1, 1, 1]} : vector<8x16x16xf32> to vector<8x16x15xf32>
    %37 = vector.extract_strided_slice %32 {offsets = [0, 0, 14], sizes = [8, 16, 1], strides = [1, 1, 1]} : vector<8x16x16xf32> to vector<8x16x1xf32>
    %38 = tpu.concatenate %36, %37 in 2 : vector<8x16x15xf32>, vector<8x16x1xf32> -> vector<8x16x16xf32>
    %39 = arith.addf %35, %32 : vector<8x16x16xf32>
    %40 = arith.addf %39, %38 : vector<8x16x16xf32>
    %cst_6 = arith.constant 9.000000e+00 : f32
    %41 = vector.broadcast %cst_6 : f32 to vector<8x16x16xf32>
    %42 = arith.mulf %41, %24 : vector<8x16x16xf32>
    %43 = arith.subf %40, %42 : vector<8x16x16xf32>
    %44 = math.absf %43 : vector<8x16x16xf32>
    %c0_7 = arith.constant 0 : index
    %c0_8 = arith.constant 0 : index
    %c0_9 = arith.constant 0 : index
    %45 = vector.load %arg3[%c0_7, %c0_8, %c0_9] : memref<8x16x16xf32, #tpu.memory_space<vmem>>, vector<8x16x16xf32>
    %46 = vector.extract_strided_slice %45 {offsets = [0, 1, 0], sizes = [8, 1, 16], strides = [1, 1, 1]} : vector<8x16x16xf32> to vector<8x1x16xf32>
    %47 = vector.extract_strided_slice %45 {offsets = [0, 0, 0], sizes = [8, 15, 16], strides = [1, 1, 1]} : vector<8x16x16xf32> to vector<8x15x16xf32>
    %48 = tpu.concatenate %46, %47 in 1 : vector<8x1x16xf32>, vector<8x15x16xf32> -> vector<8x16x16xf32>
    %49 = vector.extract_strided_slice %45 {offsets = [0, 1, 0], sizes = [8, 15, 16], strides = [1, 1, 1]} : vector<8x16x16xf32> to vector<8x15x16xf32>
    %50 = vector.extract_strided_slice %45 {offsets = [0, 14, 0], sizes = [8, 1, 16], strides = [1, 1, 1]} : vector<8x16x16xf32> to vector<8x1x16xf32>
    %51 = tpu.concatenate %49, %50 in 1 : vector<8x15x16xf32>, vector<8x1x16xf32> -> vector<8x16x16xf32>
    %52 = arith.addf %48, %45 : vector<8x16x16xf32>
    %53 = arith.addf %52, %51 : vector<8x16x16xf32>
    %54 = vector.extract_strided_slice %53 {offsets = [0, 0, 1], sizes = [8, 16, 1], strides = [1, 1, 1]} : vector<8x16x16xf32> to vector<8x16x1xf32>
    %55 = vector.extract_strided_slice %53 {offsets = [0, 0, 0], sizes = [8, 16, 15], strides = [1, 1, 1]} : vector<8x16x16xf32> to vector<8x16x15xf32>
    %56 = tpu.concatenate %54, %55 in 2 : vector<8x16x1xf32>, vector<8x16x15xf32> -> vector<8x16x16xf32>
    %57 = vector.extract_strided_slice %53 {offsets = [0, 0, 1], sizes = [8, 16, 15], strides = [1, 1, 1]} : vector<8x16x16xf32> to vector<8x16x15xf32>
    %58 = vector.extract_strided_slice %53 {offsets = [0, 0, 14], sizes = [8, 16, 1], strides = [1, 1, 1]} : vector<8x16x16xf32> to vector<8x16x1xf32>
    %59 = tpu.concatenate %57, %58 in 2 : vector<8x16x15xf32>, vector<8x16x1xf32> -> vector<8x16x16xf32>
    %60 = arith.addf %56, %53 : vector<8x16x16xf32>
    %61 = arith.addf %60, %59 : vector<8x16x16xf32>
    %cst_10 = arith.constant 9.000000e+00 : f32
    %62 = vector.broadcast %cst_10 : f32 to vector<8x16x16xf32>
    %63 = arith.mulf %62, %45 : vector<8x16x16xf32>
    %64 = arith.subf %61, %63 : vector<8x16x16xf32>
    %65 = math.absf %64 : vector<8x16x16xf32>
    %66 = arith.maximumf %44, %65 : vector<8x16x16xf32>
    %67 = arith.subf %66, %23 : vector<8x16x16xf32>
    %68 = math.absf %67 : vector<8x16x16xf32>
    %c0_11 = arith.constant 0 : index
    %c0_12 = arith.constant 0 : index
    %69 = vector.load %arg5[%c0_11, %c0_12] : memref<16x16xf32, #tpu.memory_space<vmem>>, vector<16x16xf32>
    %cst_13 = arith.constant dense<0.000000e+00> : vector<16x16xf32>
    %70 = vector.multi_reduction <add>, %68, %cst_13 [0] : vector<8x16x16xf32> to vector<16x16xf32>
    %71 = arith.addf %69, %70 : vector<16x16xf32>
    %c0_14 = arith.constant 0 : index
    %c0_15 = arith.constant 0 : index
    %72 = vector.load %arg5[%c0_14, %c0_15] : memref<16x16xf32, #tpu.memory_space<vmem>>, vector<16x16xf32>
    tpu.vector_store %arg5[%c0_14, %c0_15], %71 {strides = array<i32>} : memref<16x16xf32, #tpu.memory_space<vmem>>, vector<16x16xf32>,
    %c0_i32_16 = arith.constant 0 : i32
    %73 = arith.cmpi eq, %arg0, %c0_i32_16 : i32
    %74 = arith.extui %73 : i1 to i32
    %c0_i32_17 = arith.constant 0 : i32
    %75 = arith.cmpi ne, %74, %c0_i32_17 : i32
    scf.if %75 {
      %c0_18 = arith.constant 0 : index
      %c0_19 = arith.constant 0 : index
      %76 = vector.load %arg5[%c0_18, %c0_19] : memref<16x16xf32, #tpu.memory_space<vmem>>, vector<16x16xf32>
      %77 = vector.shape_cast %76 : vector<16x16xf32> to vector<1x16x16xf32>
      %cst_20 = arith.constant dense<0.000000e+00> : vector<1xf32>
      %78 = vector.multi_reduction <add>, %77, %cst_20 [1, 2] : vector<1x16x16xf32> to vector<1xf32>
      %79 = vector.shape_cast %78 : vector<1xf32> to vector<1x1x1xf32>
      %80 = vector.extract %79[0, 0, 0] : f32 from vector<1x1x1xf32>
      %cst_21 = arith.constant 3.05175781E-5 : f32
      %81 = arith.mulf %80, %cst_21 : f32
      %82 = vector.broadcast %81 : f32 to vector<1x1xf32>
      %c0_22 = arith.constant 0 : index
      %c0_23 = arith.constant 0 : index
      %83 = vector.load %arg4[%c0_22, %c0_23] : memref<1x1xf32, #tpu.memory_space<vmem>>, vector<1x1xf32>
      tpu.vector_store %arg4[%c0_22, %c0_23], %82 {strides = array<i32>} : memref<1x1xf32, #tpu.memory_space<vmem>>, vector<1x1xf32>,
    } else {
    }
    return
  }
  func.func @transform_0(%arg0: i32) -> (i32, i32, i32) {
    %c0_i32 = arith.constant 0 : i32
    %c0_i32_0 = arith.constant 0 : i32
    %c0_i32_1 = arith.constant 0 : i32
    return %arg0, %c0_i32, %c0_i32_0 : i32, i32, i32
  }
  func.func @transform_1(%arg0: i32) -> (i32, i32, i32) {
    %c0_i32 = arith.constant 0 : i32
    %c0_i32_0 = arith.constant 0 : i32
    %c0_i32_1 = arith.constant 0 : i32
    return %arg0, %c0_i32, %c0_i32_0 : i32, i32, i32
  }
  func.func @transform_2(%arg0: i32) -> (i32, i32, i32) {
    %c0_i32 = arith.constant 0 : i32
    %c0_i32_0 = arith.constant 0 : i32
    %c0_i32_1 = arith.constant 0 : i32
    return %arg0, %c0_i32, %c0_i32_0 : i32, i32, i32
  }
  func.func @transform_3(%arg0: i32) -> (i32, i32) {
    %c0_i32 = arith.constant 0 : i32
    %c0_i32_0 = arith.constant 0 : i32
    %c0_i32_1 = arith.constant 0 : i32
    return %c0_i32, %c0_i32_0 : i32, i32
  }
}

</mosaic_0001>

<llo_original>
// kernel: tpu_custom_call.1
$region0: #{tpu_custom_call.1}
  #allocation0 [shape = 'u32[]', space=smem, size = 0x4, offset = 0x4, fixed_abs, tag = 'smem constant byte address 0x4 - core index']
  #allocation1 [shape = 'u32[144,128]{1,0:T(1,128)}', space=vmem, size = 0x12000, scoped, tag = 'internal scratch']
  #allocation2 [shape = 'f32[16,16]{1,0:T(8,128)}', space=vmem, size = 0x2000, scoped, tag = 'scratch operand']
  %s0 = inlined_call_operand.hbm [shape: f32[8,16,16], index: 0, kind: input, shape index: {}]
  %s1 = inlined_call_operand.hbm [shape: f32[8,16,16], index: 1, kind: input, shape index: {}]
  %s2 = inlined_call_operand.hbm [shape: f32[8,16,16], index: 2, kind: input, shape index: {}]
  %s3 = inlined_call_operand.hbm [shape: f32[1,1], index: 3, kind: output, shape index: {}]
  %s4 = sld [smem:[#allocation0]]
  $region42: #{tpu_custom_call.1} parent=0
    _
  %s6 = ssub.s32 1, %s4
  %s7 = scalar_select 0, %s6, %s4
  $region1: #{tpu_custom_call.1} parent=0
    #allocation3 [shape = 'u8[65536]{0}', space=vmem, size = 0x10000, scoped, tag = 'input window, operand 0, single buffered']
    #allocation4 [shape = 's32[1]{0}', space=sflag, size = 0x4, scoped, tag = 'scoped memory for tpu_custom_call.1']
    #allocation5 [shape = 's32[1]{0}', space=sflag, size = 0x4, scoped, tag = 'scoped memory for tpu_custom_call.1']
    #allocation6 [shape = 'u8[65536]{0}', space=vmem, size = 0x10000, scoped, tag = 'input window, operand 1, single buffered']
    #allocation7 [shape = 's32[1]{0}', space=sflag, size = 0x4, scoped, tag = 'scoped memory for tpu_custom_call.1']
    #allocation8 [shape = 'u8[65536]{0}', space=vmem, size = 0x10000, scoped, tag = 'input window, operand 2, single buffered']
    #allocation9 [shape = 'u8[512]{0}', space=vmem, size = 0x400, scoped, tag = 'output window, operand 0, single buffered']
    %8 = vsyncpa [#allocation4], 0
    %9 = vsyncpa [#allocation7], 0
    %10 = vsyncpa [#allocation5], 0
    // Predicated region
    $region2: #{tpu_custom_call.1} parent=1 // pred_check
      _
    $region3: #{tpu_custom_call.1} parent=1 // pred_check_branch
      %12 = sbr.rel (0) target = $region5
    $region4: #{tpu_custom_call.1} parent=1 // pred_region
      %s14 = ssub.s32 2048, 2048
      %15 = vsyncadd [#allocation4], %s14
      %s16 = sshll.u32 [#allocation3], 4
      %s17 = int_to_ptr.vmem [resolvable:$true] %s16
      %22 = dma.hbm_to_vmem [thread:$0]  %s0, 2048, %s17, [#allocation4], 128, 128, 8
    $region5: #{tpu_custom_call.1} parent=1 // pred_fallthru
      _
    // Predicated region
    $region6: #{tpu_custom_call.1} parent=1 // pred_check
      _
    $region7: #{tpu_custom_call.1} parent=1 // pred_check_branch
      %24 = sbr.rel (0) target = $region9
    $region8: #{tpu_custom_call.1} parent=1 // pred_region
      %s26 = ssub.s32 2048, 2048
      %27 = vsyncadd [#allocation7], %s26
      %s28 = sshll.u32 [#allocation6], 4
      %s29 = int_to_ptr.vmem [resolvable:$true] %s28
      %34 = dma.hbm_to_vmem [thread:$0]  %s1, 2048, %s29, [#allocation7], 128, 128, 8
    $region9: #{tpu_custom_call.1} parent=1 // pred_fallthru
      _
    // Predicated region
    $region10: #{tpu_custom_call.1} parent=1 // pred_check
      _
    $region11: #{tpu_custom_call.1} parent=1 // pred_check_branch
      %36 = sbr.rel (0) target = $region13
    $region12: #{tpu_custom_call.1} parent=1 // pred_region
      %s38 = ssub.s32 2048, 2048
      %39 = vsyncadd [#allocation7], %s38
      %s40 = sshll.u32 [#allocation8], 4
      %s41 = int_to_ptr.vmem [resolvable:$true] %s40
      %46 = dma.hbm_to_vmem [thread:$0]  %s2, 2048, %s41, [#allocation7], 128, 128, 8
    $region13: #{tpu_custom_call.1} parent=1 // pred_fallthru
      _
    // Predicated region
    $region14: #{tpu_custom_call.1} parent=1 // pred_check
      _
    $region15: #{tpu_custom_call.1} parent=1 // pred_check_branch
      %48 = sbr.rel (0) target = $region17
    $region16: #{tpu_custom_call.1} parent=1 // pred_region
      %49 = dma.done [#allocation4], 2048
    $region17: #{tpu_custom_call.1} parent=1 // pred_fallthru
      _
    // Predicated region
    $region18: #{tpu_custom_call.1} parent=1 // pred_check
      _
    $region19: #{tpu_custom_call.1} parent=1 // pred_check_branch
      %51 = sbr.rel (0) target = $region21
    $region20: #{tpu_custom_call.1} parent=1 // pred_region
      %52 = dma.done [#allocation7], 2048
    $region21: #{tpu_custom_call.1} parent=1 // pred_fallthru
      _
    // Predicated region
    $region22: #{tpu_custom_call.1} parent=1 // pred_check
      _
    $region23: #{tpu_custom_call.1} parent=1 // pred_check_branch
      %54 = sbr.rel (0) target = $region25
    $region24: #{tpu_custom_call.1} parent=1 // pred_region
      %55 = dma.done [#allocation7], 2048
    $region25: #{tpu_custom_call.1} parent=1 // pred_fallthru
      _
    %p56 = scmp.eq.s32.totalorder 0, 0
    // Predicated region
    $region26: #{tpu_custom_call.1} parent=1 // pred_check
      %p57 = pneg %p56
    $region27: #{tpu_custom_call.1} parent=1 // pred_check_branch
      %59 = sbr.rel (%p57) target = $region29
    $region28: #{tpu_custom_call.1} parent=1 // pred_region
      %vm60 = vcmask 130048
      %61 = vst.msk [vmem:[#allocation2] sm:$0xff] %vm60, 0.0
      %62 = vst.msk [vmem:[#allocation2 + $0x8] sm:$0xff] %vm60, 0.0
    $region29: #{tpu_custom_call.1} parent=1 // pred_fallthru
      _
    %v63 = vld [vmem:[#allocation3] sm:$0xff]
    %v64 = vld [vmem:[#allocation3 + $0x8] sm:$0xff]
    %v65 = vld [vmem:[#allocation3 + $0x10] sm:$0xff]
    %v66 = vld [vmem:[#allocation3 + $0x18] sm:$0xff]
    %v67 = vld [vmem:[#allocation3 + $0x20] sm:$0xff]
    %v68 = vld [vmem:[#allocation3 + $0x28] sm:$0xff]
    %v69 = vld [vmem:[#allocation3 + $0x30] sm:$0xff]
    %v70 = vld [vmem:[#allocation3 + $0x38] sm:$0xff]
    %v71 = vld [vmem:[#allocation3 + $0x40] sm:$0xff]
    %v72 = vld [vmem:[#allocation3 + $0x48] sm:$0xff]
    %v73 = vld [vmem:[#allocation3 + $0x50] sm:$0xff]
    %v74 = vld [vmem:[#allocation3 + $0x58] sm:$0xff]
    %v75 = vld [vmem:[#allocation3 + $0x60] sm:$0xff]
    %v76 = vld [vmem:[#allocation3 + $0x68] sm:$0xff]
    %v77 = vld [vmem:[#allocation3 + $0x70] sm:$0xff]
    %v78 = vld [vmem:[#allocation3 + $0x78] sm:$0xff]
    %v87 = vrot.slane %v63, 1
    %v88 = vrot.slane %v65, 1
    %v89 = vrot.slane %v67, 1
    %v90 = vrot.slane %v69, 1
    %v91 = vrot.slane %v71, 1
    %v92 = vrot.slane %v73, 1
    %v93 = vrot.slane %v75, 1
    %v94 = vrot.slane %v77, 1
    %vm111 = vcmask 1040384
    %v112 = vrot.slane %v63, 7
    %v113 = vrot.slane %v64, 7
    %v114 = vsel %vm111, %v112, %v113
    %v115 = vrot.slane %v65, 7
    %v116 = vrot.slane %v66, 7
    %v117 = vsel %vm111, %v115, %v116
    %v118 = vrot.slane %v67, 7
    %v119 = vrot.slane %v68, 7
    %v120 = vsel %vm111, %v118, %v119
    %v121 = vrot.slane %v69, 7
    %v122 = vrot.slane %v70, 7
    %v123 = vsel %vm111, %v121, %v122
    %v124 = vrot.slane %v71, 7
    %v125 = vrot.slane %v72, 7
    %v126 = vsel %vm111, %v124, %v125
    %v127 = vrot.slane %v73, 7
    %v128 = vrot.slane %v74, 7
    %v129 = vsel %vm111, %v127, %v128
    %v130 = vrot.slane %v75, 7
    %v131 = vrot.slane %v76, 7
    %v132 = vsel %vm111, %v130, %v131
    %v133 = vrot.slane %v77, 7
    %v134 = vrot.slane %v78, 7
    %v135 = vsel %vm111, %v133, %v134
    %v152 = vsel %vm111, %v87, %v112
    %v153 = vsel %vm111, %v88, %v115
    %v154 = vsel %vm111, %v89, %v118
    %v155 = vsel %vm111, %v90, %v121
    %v156 = vsel %vm111, %v91, %v124
    %v157 = vsel %vm111, %v92, %v127
    %v158 = vsel %vm111, %v93, %v130
    %v159 = vsel %vm111, %v94, %v133
    %vm160 = vcmask 1046528
    %v161 = vrot.slane %v64, 1
    %v162 = vsel %vm160, %v87, %v161
    %v163 = vrot.slane %v66, 1
    %v164 = vsel %vm160, %v88, %v163
    %v165 = vrot.slane %v68, 1
    %v166 = vsel %vm160, %v89, %v165
    %v167 = vrot.slane %v70, 1
    %v168 = vsel %vm160, %v90, %v167
    %v169 = vrot.slane %v72, 1
    %v170 = vsel %vm160, %v91, %v169
    %v171 = vrot.slane %v74, 1
    %v172 = vsel %vm160, %v92, %v171
    %v173 = vrot.slane %v76, 1
    %v174 = vsel %vm160, %v93, %v173
    %v175 = vrot.slane %v78, 1
    %v176 = vsel %vm160, %v94, %v175
    %v201 = vsel %vm160, %v161, %v113
    %v202 = vsel %vm160, %v163, %v116
    %v203 = vsel %vm160, %v165, %v119
    %v204 = vsel %vm160, %v167, %v122
    %v205 = vsel %vm160, %v169, %v125
    %v206 = vsel %vm160, %v171, %v128
    %v207 = vsel %vm160, %v173, %v131
    %v208 = vsel %vm160, %v175, %v134
    %v209 = vadd.f32 %v152, %v63
    %v210 = vadd.f32 %v114, %v64
    %v211 = vadd.f32 %v153, %v65
    %v212 = vadd.f32 %v117, %v66
    %v213 = vadd.f32 %v154, %v67
    %v214 = vadd.f32 %v120, %v68
    %v215 = vadd.f32 %v155, %v69
    %v216 = vadd.f32 %v123, %v70
    %v217 = vadd.f32 %v156, %v71
    %v218 = vadd.f32 %v126, %v72
    %v219 = vadd.f32 %v157, %v73
    %v220 = vadd.f32 %v129, %v74
    %v221 = vadd.f32 %v158, %v75
    %v222 = vadd.f32 %v132, %v76
    %v223 = vadd.f32 %v159, %v77
    %v224 = vadd.f32 %v135, %v78
    %v225 = vadd.f32 %v209, %v162
    %v226 = vadd.f32 %v210, %v201
    %v227 = vadd.f32 %v211, %v164
    %v228 = vadd.f32 %v212, %v202
    %v229 = vadd.f32 %v213, %v166
    %v230 = vadd.f32 %v214, %v203
    %v231 = vadd.f32 %v215, %v168
    %v232 = vadd.f32 %v216, %v204
    %v233 = vadd.f32 %v217, %v170
    %v234 = vadd.f32 %v218, %v205
    %v235 = vadd.f32 %v219, %v172
    %v236 = vadd.f32 %v220, %v206
    %v237 = vadd.f32 %v221, %v174
    %v238 = vadd.f32 %v222, %v207
    %v239 = vadd.f32 %v223, %v176
    %v240 = vadd.f32 %v224, %v208
    %257 = vrot.lane.b32.xlu0 %v225, 127
    %v258 = vpop.permute.xlu0 %257
    %259 = vrot.lane.b32.xlu0 %v226, 127
    %v260 = vpop.permute.xlu0 %259
    %261 = vrot.lane.b32.xlu0 %v227, 127
    %v262 = vpop.permute.xlu0 %261
    %263 = vrot.lane.b32.xlu0 %v228, 127
    %v264 = vpop.permute.xlu0 %263
    %265 = vrot.lane.b32.xlu0 %v229, 127
    %v266 = vpop.permute.xlu0 %265
    %267 = vrot.lane.b32.xlu0 %v230, 127
    %v268 = vpop.permute.xlu0 %267
    %269 = vrot.lane.b32.xlu0 %v231, 127
    %v270 = vpop.permute.xlu0 %269
    %271 = vrot.lane.b32.xlu0 %v232, 127
    %v272 = vpop.permute.xlu0 %271
    %273 = vrot.lane.b32.xlu0 %v233, 127
    %v274 = vpop.permute.xlu0 %273
    %275 = vrot.lane.b32.xlu0 %v234, 127
    %v276 = vpop.permute.xlu0 %275
    %277 = vrot.lane.b32.xlu0 %v235, 127
    %v278 = vpop.permute.xlu0 %277
    %279 = vrot.lane.b32.xlu0 %v236, 127
    %v280 = vpop.permute.xlu0 %279
    %281 = vrot.lane.b32.xlu0 %v237, 127
    %v282 = vpop.permute.xlu0 %281
    %283 = vrot.lane.b32.xlu0 %v238, 127
    %v284 = vpop.permute.xlu0 %283
    %285 = vrot.lane.b32.xlu0 %v239, 127
    %v286 = vpop.permute.xlu0 %285
    %287 = vrot.lane.b32.xlu0 %v240, 127
    %v288 = vpop.permute.xlu0 %287
    %305 = vrot.lane.b32.xlu0 %v225, 1
    %v306 = vpop.permute.xlu0 %305
    %307 = vrot.lane.b32.xlu0 %v226, 1
    %v308 = vpop.permute.xlu0 %307
    %309 = vrot.lane.b32.xlu0 %v227, 1
    %v310 = vpop.permute.xlu0 %309
    %311 = vrot.lane.b32.xlu0 %v228, 1
    %v312 = vpop.permute.xlu0 %311
    %313 = vrot.lane.b32.xlu0 %v229, 1
    %v314 = vpop.permute.xlu0 %313
    %315 = vrot.lane.b32.xlu0 %v230, 1
    %v316 = vpop.permute.xlu0 %315
    %317 = vrot.lane.b32.xlu0 %v231, 1
    %v318 = vpop.permute.xlu0 %317
    %319 = vrot.lane.b32.xlu0 %v232, 1
    %v320 = vpop.permute.xlu0 %319
    %321 = vrot.lane.b32.xlu0 %v233, 1
    %v322 = vpop.permute.xlu0 %321
    %323 = vrot.lane.b32.xlu0 %v234, 1
    %v324 = vpop.permute.xlu0 %323
    %325 = vrot.lane.b32.xlu0 %v235, 1
    %v326 = vpop.permute.xlu0 %325
    %327 = vrot.lane.b32.xlu0 %v236, 1
    %v328 = vpop.permute.xlu0 %327
    %329 = vrot.lane.b32.xlu0 %v237, 1
    %v330 = vpop.permute.xlu0 %329
    %331 = vrot.lane.b32.xlu0 %v238, 1
    %v332 = vpop.permute.xlu0 %331
    %333 = vrot.lane.b32.xlu0 %v239, 1
    %v334 = vpop.permute.xlu0 %333
    %335 = vrot.lane.b32.xlu0 %v240, 1
    %v336 = vpop.permute.xlu0 %335
    %vm353 = vcmask 7168
    %v354 = vsel %vm353, %v258, %v306
    %v355 = vsel %vm353, %v260, %v308
    %v356 = vsel %vm353, %v262, %v310
    %v357 = vsel %vm353, %v264, %v312
    %v358 = vsel %vm353, %v266, %v314
    %v359 = vsel %vm353, %v268, %v316
    %v360 = vsel %vm353, %v270, %v318
    %v361 = vsel %vm353, %v272, %v320
    %v362 = vsel %vm353, %v274, %v322
    %v363 = vsel %vm353, %v276, %v324
    %v364 = vsel %vm353, %v278, %v326
    %v365 = vsel %vm353, %v280, %v328
    %v366 = vsel %vm353, %v282, %v330
    %v367 = vsel %vm353, %v284, %v332
    %v368 = vsel %vm353, %v286, %v334
    %v369 = vsel %vm353, %v288, %v336
    %vm370 = vcmask 121856
    %v371 = vsel %vm370, %v258, %v306
    %v372 = vsel %vm370, %v260, %v308
    %v373 = vsel %vm370, %v262, %v310
    %v374 = vsel %vm370, %v264, %v312
    %v375 = vsel %vm370, %v266, %v314
    %v376 = vsel %vm370, %v268, %v316
    %v377 = vsel %vm370, %v270, %v318
    %v378 = vsel %vm370, %v272, %v320
    %v379 = vsel %vm370, %v274, %v322
    %v380 = vsel %vm370, %v276, %v324
    %v381 = vsel %vm370, %v278, %v326
    %v382 = vsel %vm370, %v280, %v328
    %v383 = vsel %vm370, %v282, %v330
    %v384 = vsel %vm370, %v284, %v332
    %v385 = vsel %vm370, %v286, %v334
    %v386 = vsel %vm370, %v288, %v336
    %v387 = vadd.f32 %v354, %v225
    %v388 = vadd.f32 %v355, %v226
    %v389 = vadd.f32 %v356, %v227
    %v390 = vadd.f32 %v357, %v228
    %v391 = vadd.f32 %v358, %v229
    %v392 = vadd.f32 %v359, %v230
    %v393 = vadd.f32 %v360, %v231
    %v394 = vadd.f32 %v361, %v232
    %v395 = vadd.f32 %v362, %v233
    %v396 = vadd.f32 %v363, %v234
    %v397 = vadd.f32 %v364, %v235
    %v398 = vadd.f32 %v365, %v236
    %v399 = vadd.f32 %v366, %v237
    %v400 = vadd.f32 %v367, %v238
    %v401 = vadd.f32 %v368, %v239
    %v402 = vadd.f32 %v369, %v240
    %v403 = vadd.f32 %v387, %v371
    %v404 = vadd.f32 %v388, %v372
    %v405 = vadd.f32 %v389, %v373
    %v406 = vadd.f32 %v390, %v374
    %v407 = vadd.f32 %v391, %v375
    %v408 = vadd.f32 %v392, %v376
    %v409 = vadd.f32 %v393, %v377
    %v410 = vadd.f32 %v394, %v378
    %v411 = vadd.f32 %v395, %v379
    %v412 = vadd.f32 %v396, %v380
    %v413 = vadd.f32 %v397, %v381
    %v414 = vadd.f32 %v398, %v382
    %v415 = vadd.f32 %v399, %v383
    %v416 = vadd.f32 %v400, %v384
    %v417 = vadd.f32 %v401, %v385
    %v418 = vadd.f32 %v402, %v386
    %v419 = vmul.f32 %v63, 9.0
    %v420 = vmul.f32 %v64, 9.0
    %v421 = vmul.f32 %v65, 9.0
    %v422 = vmul.f32 %v66, 9.0
    %v423 = vmul.f32 %v67, 9.0
    %v424 = vmul.f32 %v68, 9.0
    %v425 = vmul.f32 %v69, 9.0
    %v426 = vmul.f32 %v70, 9.0
    %v427 = vmul.f32 %v71, 9.0
    %v428 = vmul.f32 %v72, 9.0
    %v429 = vmul.f32 %v73, 9.0
    %v430 = vmul.f32 %v74, 9.0
    %v431 = vmul.f32 %v75, 9.0
    %v432 = vmul.f32 %v76, 9.0
    %v433 = vmul.f32 %v77, 9.0
    %v434 = vmul.f32 %v78, 9.0
    %v435 = vsub.f32 %v403, %v419
    %v436 = vsub.f32 %v404, %v420
    %v437 = vsub.f32 %v405, %v421
    %v438 = vsub.f32 %v406, %v422
    %v439 = vsub.f32 %v407, %v423
    %v440 = vsub.f32 %v408, %v424
    %v441 = vsub.f32 %v409, %v425
    %v442 = vsub.f32 %v410, %v426
    %v443 = vsub.f32 %v411, %v427
    %v444 = vsub.f32 %v412, %v428
    %v445 = vsub.f32 %v413, %v429
    %v446 = vsub.f32 %v414, %v430
    %v447 = vsub.f32 %v415, %v431
    %v448 = vsub.f32 %v416, %v432
    %v449 = vsub.f32 %v417, %v433
    %v450 = vsub.f32 %v418, %v434
    %v451 = vand.u32 2147483647, %v435
    %v452 = vand.u32 2147483647, %v436
    %v453 = vand.u32 2147483647, %v437
    %v454 = vand.u32 2147483647, %v438
    %v455 = vand.u32 2147483647, %v439
    %v456 = vand.u32 2147483647, %v440
    %v457 = vand.u32 2147483647, %v441
    %v458 = vand.u32 2147483647, %v442
    %v459 = vand.u32 2147483647, %v443
    %v460 = vand.u32 2147483647, %v444
    %v461 = vand.u32 2147483647, %v445
    %v462 = vand.u32 2147483647, %v446
    %v463 = vand.u32 2147483647, %v447
    %v464 = vand.u32 2147483647, %v448
    %v465 = vand.u32 2147483647, %v449
    %v466 = vand.u32 2147483647, %v450
    %v467 = vld [vmem:[#allocation6] sm:$0xff]
    %v468 = vld [vmem:[#allocation6 + $0x8] sm:$0xff]
    %v469 = vld [vmem:[#allocation6 + $0x10] sm:$0xff]
    %v470 = vld [vmem:[#allocation6 + $0x18] sm:$0xff]
    %v471 = vld [vmem:[#allocation6 + $0x20] sm:$0xff]
    %v472 = vld [vmem:[#allocation6 + $0x28] sm:$0xff]
    %v473 = vld [vmem:[#allocation6 + $0x30] sm:$0xff]
    %v474 = vld [vmem:[#allocation6 + $0x38] sm:$0xff]
    %v475 = vld [vmem:[#allocation6 + $0x40] sm:$0xff]
    %v476 = vld [vmem:[#allocation6 + $0x48] sm:$0xff]
    %v477 = vld [vmem:[#allocation6 + $0x50] sm:$0xff]
    %v478 = vld [vmem:[#allocation6 + $0x58] sm:$0xff]
    %v479 = vld [vmem:[#allocation6 + $0x60] sm:$0xff]
    %v480 = vld [vmem:[#allocation6 + $0x68] sm:$0xff]
    %v481 = vld [vmem:[#allocation6 + $0x70] sm:$0xff]
    %v482 = vld [vmem:[#allocation6 + $0x78] sm:$0xff]
    %v491 = vrot.slane %v467, 1
    %v492 = vrot.slane %v469, 1
    %v493 = vrot.slane %v471, 1
    %v494 = vrot.slane %v473, 1
    %v495 = vrot.slane %v475, 1
    %v496 = vrot.slane %v477, 1
    %v497 = vrot.slane %v479, 1
    %v498 = vrot.slane %v481, 1
    %v515 = vrot.slane %v467, 7
    %v516 = vrot.slane %v468, 7
    %v517 = vsel %vm111, %v515, %v516
    %v518 = vrot.slane %v469, 7
    %v519 = vrot.slane %v470, 7
    %v520 = vsel %vm111, %v518, %v519
    %v521 = vrot.slane %v471, 7
    %v522 = vrot.slane %v472, 7
    %v523 = vsel %vm111, %v521, %v522
    %v524 = vrot.slane %v473, 7
    %v525 = vrot.slane %v474, 7
    %v526 = vsel %vm111, %v524, %v525
    %v527 = vrot.slane %v475, 7
    %v528 = vrot.slane %v476, 7
    %v529 = vsel %vm111, %v527, %v528
    %v530 = vrot.slane %v477, 7
    %v531 = vrot.slane %v478, 7
    %v532 = vsel %vm111, %v530, %v531
    %v533 = vrot.slane %v479, 7
    %v534 = vrot.slane %v480, 7
    %v535 = vsel %vm111, %v533, %v534
    %v536 = vrot.slane %v481, 7
    %v537 = vrot.slane %v482, 7
    %v538 = vsel %vm111, %v536, %v537
    %v555 = vsel %vm111, %v491, %v515
    %v556 = vsel %vm111, %v492, %v518
    %v557 = vsel %vm111, %v493, %v521
    %v558 = vsel %vm111, %v494, %v524
    %v559 = vsel %vm111, %v495, %v527
    %v560 = vsel %vm111, %v496, %v530
    %v561 = vsel %vm111, %v497, %v533
    %v562 = vsel %vm111, %v498, %v536
    %v563 = vrot.slane %v468, 1
    %v564 = vsel %vm160, %v491, %v563
    %v565 = vrot.slane %v470, 1
    %v566 = vsel %vm160, %v492, %v565
    %v567 = vrot.slane %v472, 1
    %v568 = vsel %vm160, %v493, %v567
    %v569 = vrot.slane %v474, 1
    %v570 = vsel %vm160, %v494, %v569
    %v571 = vrot.slane %v476, 1
    %v572 = vsel %vm160, %v495, %v571
    %v573 = vrot.slane %v478, 1
    %v574 = vsel %vm160, %v496, %v573
    %v575 = vrot.slane %v480, 1
    %v576 = vsel %vm160, %v497, %v575
    %v577 = vrot.slane %v482, 1
    %v578 = vsel %vm160, %v498, %v577
    %v603 = vsel %vm160, %v563, %v516
    %v604 = vsel %vm160, %v565, %v519
    %v605 = vsel %vm160, %v567, %v522
    %v606 = vsel %vm160, %v569, %v525
    %v607 = vsel %vm160, %v571, %v528
    %v608 = vsel %vm160, %v573, %v531
    %v609 = vsel %vm160, %v575, %v534
    %v610 = vsel %vm160, %v577, %v537
    %v611 = vadd.f32 %v555, %v467
    %v612 = vadd.f32 %v517, %v468
    %v613 = vadd.f32 %v556, %v469
    %v614 = vadd.f32 %v520, %v470
    %v615 = vadd.f32 %v557, %v471
    %v616 = vadd.f32 %v523, %v472
    %v617 = vadd.f32 %v558, %v473
    %v618 = vadd.f32 %v526, %v474
    %v619 = vadd.f32 %v559, %v475
    %v620 = vadd.f32 %v529, %v476
    %v621 = vadd.f32 %v560, %v477
    %v622 = vadd.f32 %v532, %v478
    %v623 = vadd.f32 %v561, %v479
    %v624 = vadd.f32 %v535, %v480
    %v625 = vadd.f32 %v562, %v481
    %v626 = vadd.f32 %v538, %v482
    %v627 = vadd.f32 %v611, %v564
    %v628 = vadd.f32 %v612, %v603
    %v629 = vadd.f32 %v613, %v566
    %v630 = vadd.f32 %v614, %v604
    %v631 = vadd.f32 %v615, %v568
    %v632 = vadd.f32 %v616, %v605
    %v633 = vadd.f32 %v617, %v570
    %v634 = vadd.f32 %v618, %v606
    %v635 = vadd.f32 %v619, %v572
    %v636 = vadd.f32 %v620, %v607
    %v637 = vadd.f32 %v621, %v574
    %v638 = vadd.f32 %v622, %v608
    %v639 = vadd.f32 %v623, %v576
    %v640 = vadd.f32 %v624, %v609
    %v641 = vadd.f32 %v625, %v578
    %v642 = vadd.f32 %v626, %v610
    %659 = vrot.lane.b32.xlu0 %v627, 127
    %v660 = vpop.permute.xlu0 %659
    %661 = vrot.lane.b32.xlu0 %v628, 127
    %v662 = vpop.permute.xlu0 %661
    %663 = vrot.lane.b32.xlu0 %v629, 127
    %v664 = vpop.permute.xlu0 %663
    %665 = vrot.lane.b32.xlu0 %v630, 127
    %v666 = vpop.permute.xlu0 %665
    %667 = vrot.lane.b32.xlu0 %v631, 127
    %v668 = vpop.permute.xlu0 %667
    %669 = vrot.lane.b32.xlu0 %v632, 127
    %v670 = vpop.permute.xlu0 %669
    %671 = vrot.lane.b32.xlu0 %v633, 127
    %v672 = vpop.permute.xlu0 %671
    %673 = vrot.lane.b32.xlu0 %v634, 127
    %v674 = vpop.permute.xlu0 %673
    %675 = vrot.lane.b32.xlu0 %v635, 127
    %v676 = vpop.permute.xlu0 %675
    %677 = vrot.lane.b32.xlu0 %v636, 127
    %v678 = vpop.permute.xlu0 %677
    %679 = vrot.lane.b32.xlu0 %v637, 127
    %v680 = vpop.permute.xlu0 %679
    %681 = vrot.lane.b32.xlu0 %v638, 127
    %v682 = vpop.permute.xlu0 %681
    %683 = vrot.lane.b32.xlu0 %v639, 127
    %v684 = vpop.permute.xlu0 %683
    %685 = vrot.lane.b32.xlu0 %v640, 127
    %v686 = vpop.permute.xlu0 %685
    %687 = vrot.lane.b32.xlu0 %v641, 127
    %v688 = vpop.permute.xlu0 %687
    %689 = vrot.lane.b32.xlu0 %v642, 127
    %v690 = vpop.permute.xlu0 %689
    %707 = vrot.lane.b32.xlu0 %v627, 1
    %v708 = vpop.permute.xlu0 %707
    %709 = vrot.lane.b32.xlu0 %v628, 1
    %v710 = vpop.permute.xlu0 %709
    %711 = vrot.lane.b32.xlu0 %v629, 1
    %v712 = vpop.permute.xlu0 %711
    %713 = vrot.lane.b32.xlu0 %v630, 1
    %v714 = vpop.permute.xlu0 %713
    %715 = vrot.lane.b32.xlu0 %v631, 1
    %v716 = vpop.permute.xlu0 %715
    %717 = vrot.lane.b32.xlu0 %v632, 1
    %v718 = vpop.permute.xlu0 %717
    %719 = vrot.lane.b32.xlu0 %v633, 1
    %v720 = vpop.permute.xlu0 %719
    %721 = vrot.lane.b32.xlu0 %v634, 1
    %v722 = vpop.permute.xlu0 %721
    %723 = vrot.lane.b32.xlu0 %v635, 1
    %v724 = vpop.permute.xlu0 %723
    %725 = vrot.lane.b32.xlu0 %v636, 1
    %v726 = vpop.permute.xlu0 %725
    %727 = vrot.lane.b32.xlu0 %v637, 1
    %v728 = vpop.permute.xlu0 %727
    %729 = vrot.lane.b32.xlu0 %v638, 1
    %v730 = vpop.permute.xlu0 %729
    %731 = vrot.lane.b32.xlu0 %v639, 1
    %v732 = vpop.permute.xlu0 %731
    %733 = vrot.lane.b32.xlu0 %v640, 1
    %v734 = vpop.permute.xlu0 %733
    %735 = vrot.lane.b32.xlu0 %v641, 1
    %v736 = vpop.permute.xlu0 %735
    %737 = vrot.lane.b32.xlu0 %v642, 1
    %v738 = vpop.permute.xlu0 %737
    %v755 = vsel %vm353, %v660, %v708
    %v756 = vsel %vm353, %v662, %v710
    %v757 = vsel %vm353, %v664, %v712
    %v758 = vsel %vm353, %v666, %v714
    %v759 = vsel %vm353, %v668, %v716
    %v760 = vsel %vm353, %v670, %v718
    %v761 = vsel %vm353, %v672, %v720
    %v762 = vsel %vm353, %v674, %v722
    %v763 = vsel %vm353, %v676, %v724
    %v764 = vsel %vm353, %v678, %v726
    %v765 = vsel %vm353, %v680, %v728
    %v766 = vsel %vm353, %v682, %v730
    %v767 = vsel %vm353, %v684, %v732
    %v768 = vsel %vm353, %v686, %v734
    %v769 = vsel %vm353, %v688, %v736
    %v770 = vsel %vm353, %v690, %v738
    %v771 = vsel %vm370, %v660, %v708
    %v772 = vsel %vm370, %v662, %v710
    %v773 = vsel %vm370, %v664, %v712
    %v774 = vsel %vm370, %v666, %v714
    %v775 = vsel %vm370, %v668, %v716
    %v776 = vsel %vm370, %v670, %v718
    %v777 = vsel %vm370, %v672, %v720
    %v778 = vsel %vm370, %v674, %v722
    %v779 = vsel %vm370, %v676, %v724
    %v780 = vsel %vm370, %v678, %v726
    %v781 = vsel %vm370, %v680, %v728
    %v782 = vsel %vm370, %v682, %v730
    %v783 = vsel %vm370, %v684, %v732
    %v784 = vsel %vm370, %v686, %v734
    %v785 = vsel %vm370, %v688, %v736
    %v786 = vsel %vm370, %v690, %v738
    %v787 = vadd.f32 %v755, %v627
    %v788 = vadd.f32 %v756, %v628
    %v789 = vadd.f32 %v757, %v629
    %v790 = vadd.f32 %v758, %v630
    %v791 = vadd.f32 %v759, %v631
    %v792 = vadd.f32 %v760, %v632
    %v793 = vadd.f32 %v761, %v633
    %v794 = vadd.f32 %v762, %v634
    %v795 = vadd.f32 %v763, %v635
    %v796 = vadd.f32 %v764, %v636
    %v797 = vadd.f32 %v765, %v637
    %v798 = vadd.f32 %v766, %v638
    %v799 = vadd.f32 %v767, %v639
    %v800 = vadd.f32 %v768, %v640
    %v801 = vadd.f32 %v769, %v641
    %v802 = vadd.f32 %v770, %v642
    %v803 = vadd.f32 %v787, %v771
    %v804 = vadd.f32 %v788, %v772
    %v805 = vadd.f32 %v789, %v773
    %v806 = vadd.f32 %v790, %v774
    %v807 = vadd.f32 %v791, %v775
    %v808 = vadd.f32 %v792, %v776
    %v809 = vadd.f32 %v793, %v777
    %v810 = vadd.f32 %v794, %v778
    %v811 = vadd.f32 %v795, %v779
    %v812 = vadd.f32 %v796, %v780
    %v813 = vadd.f32 %v797, %v781
    %v814 = vadd.f32 %v798, %v782
    %v815 = vadd.f32 %v799, %v783
    %v816 = vadd.f32 %v800, %v784
    %v817 = vadd.f32 %v801, %v785
    %v818 = vadd.f32 %v802, %v786
    %v819 = vmul.f32 %v467, 9.0
    %v820 = vmul.f32 %v468, 9.0
    %v821 = vmul.f32 %v469, 9.0
    %v822 = vmul.f32 %v470, 9.0
    %v823 = vmul.f32 %v471, 9.0
    %v824 = vmul.f32 %v472, 9.0
    %v825 = vmul.f32 %v473, 9.0
    %v826 = vmul.f32 %v474, 9.0
    %v827 = vmul.f32 %v475, 9.0
    %v828 = vmul.f32 %v476, 9.0
    %v829 = vmul.f32 %v477, 9.0
    %v830 = vmul.f32 %v478, 9.0
    %v831 = vmul.f32 %v479, 9.0
    %v832 = vmul.f32 %v480, 9.0
    %v833 = vmul.f32 %v481, 9.0
    %v834 = vmul.f32 %v482, 9.0
    %v835 = vsub.f32 %v803, %v819
    %v836 = vsub.f32 %v804, %v820
    %v837 = vsub.f32 %v805, %v821
    %v838 = vsub.f32 %v806, %v822
    %v839 = vsub.f32 %v807, %v823
    %v840 = vsub.f32 %v808, %v824
    %v841 = vsub.f32 %v809, %v825
    %v842 = vsub.f32 %v810, %v826
    %v843 = vsub.f32 %v811, %v827
    %v844 = vsub.f32 %v812, %v828
    %v845 = vsub.f32 %v813, %v829
    %v846 = vsub.f32 %v814, %v830
    %v847 = vsub.f32 %v815, %v831
    %v848 = vsub.f32 %v816, %v832
    %v849 = vsub.f32 %v817, %v833
    %v850 = vsub.f32 %v818, %v834
    %v851 = vand.u32 2147483647, %v835
    %v852 = vand.u32 2147483647, %v836
    %v853 = vand.u32 2147483647, %v837
    %v854 = vand.u32 2147483647, %v838
    %v855 = vand.u32 2147483647, %v839
    %v856 = vand.u32 2147483647, %v840
    %v857 = vand.u32 2147483647, %v841
    %v858 = vand.u32 2147483647, %v842
    %v859 = vand.u32 2147483647, %v843
    %v860 = vand.u32 2147483647, %v844
    %v861 = vand.u32 2147483647, %v845
    %v862 = vand.u32 2147483647, %v846
    %v863 = vand.u32 2147483647, %v847
    %v864 = vand.u32 2147483647, %v848
    %v865 = vand.u32 2147483647, %v849
    %v866 = vand.u32 2147483647, %v850
    %v867 = vld [vmem:[#allocation8] sm:$0xff]
    %v868 = vld [vmem:[#allocation8 + $0x8] sm:$0xff]
    %v869 = vld [vmem:[#allocation8 + $0x10] sm:$0xff]
    %v870 = vld [vmem:[#allocation8 + $0x18] sm:$0xff]
    %v871 = vld [vmem:[#allocation8 + $0x20] sm:$0xff]
    %v872 = vld [vmem:[#allocation8 + $0x28] sm:$0xff]
    %v873 = vld [vmem:[#allocation8 + $0x30] sm:$0xff]
    %v874 = vld [vmem:[#allocation8 + $0x38] sm:$0xff]
    %v875 = vld [vmem:[#allocation8 + $0x40] sm:$0xff]
    %v876 = vld [vmem:[#allocation8 + $0x48] sm:$0xff]
    %v877 = vld [vmem:[#allocation8 + $0x50] sm:$0xff]
    %v878 = vld [vmem:[#allocation8 + $0x58] sm:$0xff]
    %v879 = vld [vmem:[#allocation8 + $0x60] sm:$0xff]
    %v880 = vld [vmem:[#allocation8 + $0x68] sm:$0xff]
    %v881 = vld [vmem:[#allocation8 + $0x70] sm:$0xff]
    %v882 = vld [vmem:[#allocation8 + $0x78] sm:$0xff]
    %v891 = vrot.slane %v867, 1
    %v892 = vrot.slane %v869, 1
    %v893 = vrot.slane %v871, 1
    %v894 = vrot.slane %v873, 1
    %v895 = vrot.slane %v875, 1
    %v896 = vrot.slane %v877, 1
    %v897 = vrot.slane %v879, 1
    %v898 = vrot.slane %v881, 1
    %v915 = vrot.slane %v867, 7
    %v916 = vrot.slane %v868, 7
    %v917 = vsel %vm111, %v915, %v916
    %v918 = vrot.slane %v869, 7
    %v919 = vrot.slane %v870, 7
    %v920 = vsel %vm111, %v918, %v919
    %v921 = vrot.slane %v871, 7
    %v922 = vrot.slane %v872, 7
    %v923 = vsel %vm111, %v921, %v922
    %v924 = vrot.slane %v873, 7
    %v925 = vrot.slane %v874, 7
    %v926 = vsel %vm111, %v924, %v925
    %v927 = vrot.slane %v875, 7
    %v928 = vrot.slane %v876, 7
    %v929 = vsel %vm111, %v927, %v928
    %v930 = vrot.slane %v877, 7
    %v931 = vrot.slane %v878, 7
    %v932 = vsel %vm111, %v930, %v931
    %v933 = vrot.slane %v879, 7
    %v934 = vrot.slane %v880, 7
    %v935 = vsel %vm111, %v933, %v934
    %v936 = vrot.slane %v881, 7
    %v937 = vrot.slane %v882, 7
    %v938 = vsel %vm111, %v936, %v937
    %v955 = vsel %vm111, %v891, %v915
    %v956 = vsel %vm111, %v892, %v918
    %v957 = vsel %vm111, %v893, %v921
    %v958 = vsel %vm111, %v894, %v924
    %v959 = vsel %vm111, %v895, %v927
    %v960 = vsel %vm111, %v896, %v930
    %v961 = vsel %vm111, %v897, %v933
    %v962 = vsel %vm111, %v898, %v936
    %v963 = vrot.slane %v868, 1
    %v964 = vsel %vm160, %v891, %v963
    %v965 = vrot.slane %v870, 1
    %v966 = vsel %vm160, %v892, %v965
    %v967 = vrot.slane %v872, 1
    %v968 = vsel %vm160, %v893, %v967
    %v969 = vrot.slane %v874, 1
    %v970 = vsel %vm160, %v894, %v969
    %v971 = vrot.slane %v876, 1
    %v972 = vsel %vm160, %v895, %v971
    %v973 = vrot.slane %v878, 1
    %v974 = vsel %vm160, %v896, %v973
    %v975 = vrot.slane %v880, 1
    %v976 = vsel %vm160, %v897, %v975
    %v977 = vrot.slane %v882, 1
    %v978 = vsel %vm160, %v898, %v977
    %v1003 = vsel %vm160, %v963, %v916
    %v1004 = vsel %vm160, %v965, %v919
    %v1005 = vsel %vm160, %v967, %v922
    %v1006 = vsel %vm160, %v969, %v925
    %v1007 = vsel %vm160, %v971, %v928
    %v1008 = vsel %vm160, %v973, %v931
    %v1009 = vsel %vm160, %v975, %v934
    %v1010 = vsel %vm160, %v977, %v937
    %v1011 = vadd.f32 %v955, %v867
    %v1012 = vadd.f32 %v917, %v868
    %v1013 = vadd.f32 %v956, %v869
    %v1014 = vadd.f32 %v920, %v870
    %v1015 = vadd.f32 %v957, %v871
    %v1016 = vadd.f32 %v923, %v872
    %v1017 = vadd.f32 %v958, %v873
    %v1018 = vadd.f32 %v926, %v874
    %v1019 = vadd.f32 %v959, %v875
    %v1020 = vadd.f32 %v929, %v876
    %v1021 = vadd.f32 %v960, %v877
    %v1022 = vadd.f32 %v932, %v878
    %v1023 = vadd.f32 %v961, %v879
    %v1024 = vadd.f32 %v935, %v880
    %v1025 = vadd.f32 %v962, %v881
    %v1026 = vadd.f32 %v938, %v882
    %v1027 = vadd.f32 %v1011, %v964
    %v1028 = vadd.f32 %v1012, %v1003
    %v1029 = vadd.f32 %v1013, %v966
    %v1030 = vadd.f32 %v1014, %v1004
    %v1031 = vadd.f32 %v1015, %v968
    %v1032 = vadd.f32 %v1016, %v1005
    %v1033 = vadd.f32 %v1017, %v970
    %v1034 = vadd.f32 %v1018, %v1006
    %v1035 = vadd.f32 %v1019, %v972
    %v1036 = vadd.f32 %v1020, %v1007
    %v1037 = vadd.f32 %v1021, %v974
    %v1038 = vadd.f32 %v1022, %v1008
    %v1039 = vadd.f32 %v1023, %v976
    %v1040 = vadd.f32 %v1024, %v1009
    %v1041 = vadd.f32 %v1025, %v978
    %v1042 = vadd.f32 %v1026, %v1010
    %1059 = vrot.lane.b32.xlu0 %v1027, 127
    %v1060 = vpop.permute.xlu0 %1059
    %1061 = vrot.lane.b32.xlu0 %v1028, 127
    %v1062 = vpop.permute.xlu0 %1061
    %1063 = vrot.lane.b32.xlu0 %v1029, 127
    %v1064 = vpop.permute.xlu0 %1063
    %1065 = vrot.lane.b32.xlu0 %v1030, 127
    %v1066 = vpop.permute.xlu0 %1065
    %1067 = vrot.lane.b32.xlu0 %v1031, 127
    %v1068 = vpop.permute.xlu0 %1067
    %1069 = vrot.lane.b32.xlu0 %v1032, 127
    %v1070 = vpop.permute.xlu0 %1069
    %1071 = vrot.lane.b32.xlu0 %v1033, 127
    %v1072 = vpop.permute.xlu0 %1071
    %1073 = vrot.lane.b32.xlu0 %v1034, 127
    %v1074 = vpop.permute.xlu0 %1073
    %1075 = vrot.lane.b32.xlu0 %v1035, 127
    %v1076 = vpop.permute.xlu0 %1075
    %1077 = vrot.lane.b32.xlu0 %v1036, 127
    %v1078 = vpop.permute.xlu0 %1077
    %1079 = vrot.lane.b32.xlu0 %v1037, 127
    %v1080 = vpop.permute.xlu0 %1079
    %1081 = vrot.lane.b32.xlu0 %v1038, 127
    %v1082 = vpop.permute.xlu0 %1081
    %1083 = vrot.lane.b32.xlu0 %v1039, 127
    %v1084 = vpop.permute.xlu0 %1083
    %1085 = vrot.lane.b32.xlu0 %v1040, 127
    %v1086 = vpop.permute.xlu0 %1085
    %1087 = vrot.lane.b32.xlu0 %v1041, 127
    %v1088 = vpop.permute.xlu0 %1087
    %1089 = vrot.lane.b32.xlu0 %v1042, 127
    %v1090 = vpop.permute.xlu0 %1089
    %1107 = vrot.lane.b32.xlu0 %v1027, 1
    %v1108 = vpop.permute.xlu0 %1107
    %1109 = vrot.lane.b32.xlu0 %v1028, 1
    %v1110 = vpop.permute.xlu0 %1109
    %1111 = vrot.lane.b32.xlu0 %v1029, 1
    %v1112 = vpop.permute.xlu0 %1111
    %1113 = vrot.lane.b32.xlu0 %v1030, 1
    %v1114 = vpop.permute.xlu0 %1113
    %1115 = vrot.lane.b32.xlu0 %v1031, 1
    %v1116 = vpop.permute.xlu0 %1115
    %1117 = vrot.lane.b32.xlu0 %v1032, 1
    %v1118 = vpop.permute.xlu0 %1117
    %1119 = vrot.lane.b32.xlu0 %v1033, 1
    %v1120 = vpop.permute.xlu0 %1119
    %1121 = vrot.lane.b32.xlu0 %v1034, 1
    %v1122 = vpop.permute.xlu0 %1121
    %1123 = vrot.lane.b32.xlu0 %v1035, 1
    %v1124 = vpop.permute.xlu0 %1123
    %1125 = vrot.lane.b32.xlu0 %v1036, 1
    %v1126 = vpop.permute.xlu0 %1125
    %1127 = vrot.lane.b32.xlu0 %v1037, 1
    %v1128 = vpop.permute.xlu0 %1127
    %1129 = vrot.lane.b32.xlu0 %v1038, 1
    %v1130 = vpop.permute.xlu0 %1129
    %1131 = vrot.lane.b32.xlu0 %v1039, 1
    %v1132 = vpop.permute.xlu0 %1131
    %1133 = vrot.lane.b32.xlu0 %v1040, 1
    %v1134 = vpop.permute.xlu0 %1133
    %1135 = vrot.lane.b32.xlu0 %v1041, 1
    %v1136 = vpop.permute.xlu0 %1135
    %1137 = vrot.lane.b32.xlu0 %v1042, 1
    %v1138 = vpop.permute.xlu0 %1137
    %v1155 = vsel %vm353, %v1060, %v1108
    %v1156 = vsel %vm353, %v1062, %v1110
    %v1157 = vsel %vm353, %v1064, %v1112
    %v1158 = vsel %vm353, %v1066, %v1114
    %v1159 = vsel %vm353, %v1068, %v1116
    %v1160 = vsel %vm353, %v1070, %v1118
    %v1161 = vsel %vm353, %v1072, %v1120
    %v1162 = vsel %vm353, %v1074, %v1122
    %v1163 = vsel %vm353, %v1076, %v1124
    %v1164 = vsel %vm353, %v1078, %v1126
    %v1165 = vsel %vm353, %v1080, %v1128
    %v1166 = vsel %vm353, %v1082, %v1130
    %v1167 = vsel %vm353, %v1084, %v1132
    %v1168 = vsel %vm353, %v1086, %v1134
    %v1169 = vsel %vm353, %v1088, %v1136
    %v1170 = vsel %vm353, %v1090, %v1138
    %v1171 = vsel %vm370, %v1060, %v1108
    %v1172 = vsel %vm370, %v1062, %v1110
    %v1173 = vsel %vm370, %v1064, %v1112
    %v1174 = vsel %vm370, %v1066, %v1114
    %v1175 = vsel %vm370, %v1068, %v1116
    %v1176 = vsel %vm370, %v1070, %v1118
    %v1177 = vsel %vm370, %v1072, %v1120
    %v1178 = vsel %vm370, %v1074, %v1122
    %v1179 = vsel %vm370, %v1076, %v1124
    %v1180 = vsel %vm370, %v1078, %v1126
    %v1181 = vsel %vm370, %v1080, %v1128
    %v1182 = vsel %vm370, %v1082, %v1130
    %v1183 = vsel %vm370, %v1084, %v1132
    %v1184 = vsel %vm370, %v1086, %v1134
    %v1185 = vsel %vm370, %v1088, %v1136
    %v1186 = vsel %vm370, %v1090, %v1138
    %v1187 = vadd.f32 %v1155, %v1027
    %v1188 = vadd.f32 %v1156, %v1028
    %v1189 = vadd.f32 %v1157, %v1029
    %v1190 = vadd.f32 %v1158, %v1030
    %v1191 = vadd.f32 %v1159, %v1031
    %v1192 = vadd.f32 %v1160, %v1032
    %v1193 = vadd.f32 %v1161, %v1033
    %v1194 = vadd.f32 %v1162, %v1034
    %v1195 = vadd.f32 %v1163, %v1035
    %v1196 = vadd.f32 %v1164, %v1036
    %v1197 = vadd.f32 %v1165, %v1037
    %v1198 = vadd.f32 %v1166, %v1038
    %v1199 = vadd.f32 %v1167, %v1039
    %v1200 = vadd.f32 %v1168, %v1040
    %v1201 = vadd.f32 %v1169, %v1041
    %v1202 = vadd.f32 %v1170, %v1042
    %v1203 = vadd.f32 %v1187, %v1171
    %v1204 = vadd.f32 %v1188, %v1172
    %v1205 = vadd.f32 %v1189, %v1173
    %v1206 = vadd.f32 %v1190, %v1174
    %v1207 = vadd.f32 %v1191, %v1175
    %v1208 = vadd.f32 %v1192, %v1176
    %v1209 = vadd.f32 %v1193, %v1177
    %v1210 = vadd.f32 %v1194, %v1178
    %v1211 = vadd.f32 %v1195, %v1179
    %v1212 = vadd.f32 %v1196, %v1180
    %v1213 = vadd.f32 %v1197, %v1181
    %v1214 = vadd.f32 %v1198, %v1182
    %v1215 = vadd.f32 %v1199, %v1183
    %v1216 = vadd.f32 %v1200, %v1184
    %v1217 = vadd.f32 %v1201, %v1185
    %v1218 = vadd.f32 %v1202, %v1186
    %v1219 = vmul.f32 %v867, 9.0
    %v1220 = vmul.f32 %v868, 9.0
    %v1221 = vmul.f32 %v869, 9.0
    %v1222 = vmul.f32 %v870, 9.0
    %v1223 = vmul.f32 %v871, 9.0
    %v1224 = vmul.f32 %v872, 9.0
    %v1225 = vmul.f32 %v873, 9.0
    %v1226 = vmul.f32 %v874, 9.0
    %v1227 = vmul.f32 %v875, 9.0
    %v1228 = vmul.f32 %v876, 9.0
    %v1229 = vmul.f32 %v877, 9.0
    %v1230 = vmul.f32 %v878, 9.0
    %v1231 = vmul.f32 %v879, 9.0
    %v1232 = vmul.f32 %v880, 9.0
    %v1233 = vmul.f32 %v881, 9.0
    %v1234 = vmul.f32 %v882, 9.0
    %v1235 = vsub.f32 %v1203, %v1219
    %v1236 = vsub.f32 %v1204, %v1220
    %v1237 = vsub.f32 %v1205, %v1221
    %v1238 = vsub.f32 %v1206, %v1222
    %v1239 = vsub.f32 %v1207, %v1223
    %v1240 = vsub.f32 %v1208, %v1224
    %v1241 = vsub.f32 %v1209, %v1225
    %v1242 = vsub.f32 %v1210, %v1226
    %v1243 = vsub.f32 %v1211, %v1227
    %v1244 = vsub.f32 %v1212, %v1228
    %v1245 = vsub.f32 %v1213, %v1229
    %v1246 = vsub.f32 %v1214, %v1230
    %v1247 = vsub.f32 %v1215, %v1231
    %v1248 = vsub.f32 %v1216, %v1232
    %v1249 = vsub.f32 %v1217, %v1233
    %v1250 = vsub.f32 %v1218, %v1234
    %v1251 = vand.u32 2147483647, %v1235
    %v1252 = vand.u32 2147483647, %v1236
    %v1253 = vand.u32 2147483647, %v1237
    %v1254 = vand.u32 2147483647, %v1238
    %v1255 = vand.u32 2147483647, %v1239
    %v1256 = vand.u32 2147483647, %v1240
    %v1257 = vand.u32 2147483647, %v1241
    %v1258 = vand.u32 2147483647, %v1242
    %v1259 = vand.u32 2147483647, %v1243
    %v1260 = vand.u32 2147483647, %v1244
    %v1261 = vand.u32 2147483647, %v1245
    %v1262 = vand.u32 2147483647, %v1246
    %v1263 = vand.u32 2147483647, %v1247
    %v1264 = vand.u32 2147483647, %v1248
    %v1265 = vand.u32 2147483647, %v1249
    %v1266 = vand.u32 2147483647, %v1250
    %v1267 = vmax.f32 %v851, %v1251
    %v1268 = vmax.f32 %v852, %v1252
    %v1269 = vmax.f32 %v853, %v1253
    %v1270 = vmax.f32 %v854, %v1254
    %v1271 = vmax.f32 %v855, %v1255
    %v1272 = vmax.f32 %v856, %v1256
    %v1273 = vmax.f32 %v857, %v1257
    %v1274 = vmax.f32 %v858, %v1258
    %v1275 = vmax.f32 %v859, %v1259
    %v1276 = vmax.f32 %v860, %v1260
    %v1277 = vmax.f32 %v861, %v1261
    %v1278 = vmax.f32 %v862, %v1262
    %v1279 = vmax.f32 %v863, %v1263
    %v1280 = vmax.f32 %v864, %v1264
    %v1281 = vmax.f32 %v865, %v1265
    %v1282 = vmax.f32 %v866, %v1266
    %v1283 = vsub.f32 %v1267, %v451
    %v1284 = vsub.f32 %v1268, %v452
    %v1285 = vsub.f32 %v1269, %v453
    %v1286 = vsub.f32 %v1270, %v454
    %v1287 = vsub.f32 %v1271, %v455
    %v1288 = vsub.f32 %v1272, %v456
    %v1289 = vsub.f32 %v1273, %v457
    %v1290 = vsub.f32 %v1274, %v458
    %v1291 = vsub.f32 %v1275, %v459
    %v1292 = vsub.f32 %v1276, %v460
    %v1293 = vsub.f32 %v1277, %v461
    %v1294 = vsub.f32 %v1278, %v462
    %v1295 = vsub.f32 %v1279, %v463
    %v1296 = vsub.f32 %v1280, %v464
    %v1297 = vsub.f32 %v1281, %v465
    %v1298 = vsub.f32 %v1282, %v466
    %v1299 = vand.u32 2147483647, %v1283
    %v1300 = vand.u32 2147483647, %v1284
    %v1301 = vand.u32 2147483647, %v1285
    %v1302 = vand.u32 2147483647, %v1286
    %v1303 = vand.u32 2147483647, %v1287
    %v1304 = vand.u32 2147483647, %v1288
    %v1305 = vand.u32 2147483647, %v1289
    %v1306 = vand.u32 2147483647, %v1290
    %v1307 = vand.u32 2147483647, %v1291
    %v1308 = vand.u32 2147483647, %v1292
    %v1309 = vand.u32 2147483647, %v1293
    %v1310 = vand.u32 2147483647, %v1294
    %v1311 = vand.u32 2147483647, %v1295
    %v1312 = vand.u32 2147483647, %v1296
    %v1313 = vand.u32 2147483647, %v1297
    %v1314 = vand.u32 2147483647, %v1298
    %v1315 = vld [vmem:[#allocation2] sm:$0xff]
    %v1316 = vld [vmem:[#allocation2 + $0x8] sm:$0xff]
    %vm1317 = vcmask 130048
    %v1318 = vsel %vm1317, %v1299, 0.0
    %v1319 = vsel %vm1317, %v1301, 0.0
    %v1320 = vadd.f32 %v1318, %v1319
    %v1321 = vsel %vm1317, %v1303, 0.0
    %v1322 = vadd.f32 %v1320, %v1321
    %v1323 = vsel %vm1317, %v1305, 0.0
    %v1324 = vadd.f32 %v1322, %v1323
    %v1325 = vsel %vm1317, %v1307, 0.0
    %v1326 = vadd.f32 %v1324, %v1325
    %v1327 = vsel %vm1317, %v1309, 0.0
    %v1328 = vadd.f32 %v1326, %v1327
    %v1329 = vsel %vm1317, %v1311, 0.0
    %v1330 = vadd.f32 %v1328, %v1329
    %v1331 = vsel %vm1317, %v1313, 0.0
    %v1332 = vadd.f32 %v1330, %v1331
    %v1333 = vsel %vm1317, %v1300, 0.0
    %v1334 = vsel %vm1317, %v1302, 0.0
    %v1335 = vadd.f32 %v1333, %v1334
    %v1336 = vsel %vm1317, %v1304, 0.0
    %v1337 = vadd.f32 %v1335, %v1336
    %v1338 = vsel %vm1317, %v1306, 0.0
    %v1339 = vadd.f32 %v1337, %v1338
    %v1340 = vsel %vm1317, %v1308, 0.0
    %v1341 = vadd.f32 %v1339, %v1340
    %v1342 = vsel %vm1317, %v1310, 0.0
    %v1343 = vadd.f32 %v1341, %v1342
    %v1344 = vsel %vm1317, %v1312, 0.0
    %v1345 = vadd.f32 %v1343, %v1344
    %v1346 = vsel %vm1317, %v1314, 0.0
    %v1347 = vadd.f32 %v1345, %v1346
    %v1348 = vadd.f32 %v1315, %v1332
    %v1349 = vadd.f32 %v1316, %v1347
    %1350 = vst.msk [vmem:[#allocation2] sm:$0xff] %vm1317, %v1348
    %1351 = vst.msk [vmem:[#allocation2 + $0x8] sm:$0xff] %vm1317, %v1349
    // Predicated region
    $region30: #{tpu_custom_call.1} parent=1 // pred_check
      %p1352 = pneg %p56
    $region31: #{tpu_custom_call.1} parent=1 // pred_check_branch
      %1354 = sbr.rel (%p1352) target = $region33
    $region32: #{tpu_custom_call.1} parent=1 // pred_region
      %v1355 = vld [vmem:[#allocation2] sm:$0xff]
      %v1356 = vld [vmem:[#allocation2 + $0x8] sm:$0xff]
      %v1357 = vsel %vm1317, %v1355, 0.0
      %v1358 = vsel %vm1317, %v1356, 0.0
      %v1359 = vadd.f32 %v1357, %v1358
      %1360 = vadd.xlane.f32.xlu0 %v1359
      %v1361 = vpop.xlane.xlu0 %1360
      %v1362 = vrot.slane %v1361, 4
      %v1363 = vadd.f32 %v1361, %v1362
      %v1364 = vrot.slane %v1363, 2
      %v1365 = vadd.f32 %v1363, %v1364
      %v1366 = vrot.slane %v1365, 1
      %v1367 = vadd.f32 %v1365, %v1366
      %s1368 = vtos %v1367
      %s1369 = smul.f32 %s1368, 3.0517578e-05
      %v1370 = vstv %s1369
      %vm1371 = vcmask 0
      %1372 = vst.msk [vmem:[#allocation9] sm:$0x1] %vm1371, %v1370
    $region33: #{tpu_custom_call.1} parent=1 // pred_fallthru
      _
    // Predicated region
    $region34: #{tpu_custom_call.1} parent=1 // pred_check
      _
    $region35: #{tpu_custom_call.1} parent=1 // pred_check_branch
      %1374 = sbr.rel (0) target = $region37
    $region36: #{tpu_custom_call.1} parent=1 // pred_region
      %s1376 = ssub.s32 16, 16
      %1377 = vsyncadd [#allocation5], %s1376
      %s1379 = sshll.u32 [#allocation9], 4
      %s1380 = int_to_ptr.vmem [resolvable:$true] %s1379
      %1382 = dma.vmem_to_hbm [thread:$0]  %s1380, 16, %s3, [#allocation5]
    $region37: #{tpu_custom_call.1} parent=1 // pred_fallthru
      _
    // Predicated region
    $region38: #{tpu_custom_call.1} parent=1 // pred_check
      _
    $region39: #{tpu_custom_call.1} parent=1 // pred_check_branch
      %1384 = sbr.rel (0) target = $region41
    $region40: #{tpu_custom_call.1} parent=1 // pred_region
      %1385 = dma.done [#allocation5], 16
    $region41: #{tpu_custom_call.1} parent=1 // pred_fallthru
      _
    %1386 = vsyncpa [#allocation4], 1
    %1387 = vsyncpa [#allocation7], 1
    %1388 = vsyncpa [#allocation5], 1

</llo_original>
